<compile_context>
chip_gen: v7x
topology: tpu7x:2x2x1
jax: 0.10.0
libtpu: 0.0.40
codegen_flags: <defaults>
</compile_context>

<pallas_src>
import functools

import jax
import jax.numpy as jnp
from jax import lax
from jax.experimental import pallas as pl
from jax.experimental.pallas import tpu as pltpu

NEG_SLOPE = 0.01  # nn.LeakyReLU() default negative_slope


def _leaky_relu(v):
    return jnp.where(v > 0, v, NEG_SLOPE * v)


def _round_up(n, m):
    return ((n + m - 1) // m) * m


def encoder_kernel(x_ref, w1_ref, b1_ref, w2_ref, b2_ref, w3_ref, b3_ref, o_ref,
                   *, compute_dtype, precision):
    # Whole 3-layer MLP fused in one kernel invocation per batch tile.
    # Matmuls run on the MXU in `compute_dtype` with f32 accumulation; bias add and
    # LeakyReLU stay in f32 on the VPU.
    x = x_ref[...].astype(compute_dtype)

    h = jnp.dot(x, w1_ref[...].astype(compute_dtype),
                preferred_element_type=jnp.float32, precision=precision) + b1_ref[...]
    h = _leaky_relu(h)

    h = jnp.dot(h.astype(compute_dtype), w2_ref[...].astype(compute_dtype),
                preferred_element_type=jnp.float32, precision=precision) + b2_ref[...]
    h = _leaky_relu(h)

    h = jnp.dot(h.astype(compute_dtype), w3_ref[...].astype(compute_dtype),
                preferred_element_type=jnp.float32, precision=precision) + b3_ref[...]
    o_ref[...] = _leaky_relu(h).astype(o_ref.dtype)


@functools.partial(jax.jit, static_argnames=("tb", "compute_dtype"))
def encoder_forward(x, w1, b1, w2, b2, w3, b3, *, tb=1024, compute_dtype=jnp.bfloat16):
    B, D_in = x.shape
    D1 = w1.shape[1]
    D2 = w2.shape[1]
    D_out = w3.shape[1]

    # ---- batch tiling: no padding, ragged last tile handled by Pallas block clipping ----
    if B <= tb:
        tb_eff = B               # block == full array dim -> exempt from the sublane-8 rule
        n_tiles = 1
    else:
        tb_eff = tb              # multiple of 8
        n_tiles = pl.cdiv(B, tb_eff)
        # v7x (2 TCs) shards the "parallel" grid axis: prefer an even tile count when tiles
        # stay >= 256 rows so both cores get equal work.
        if n_tiles % 2 == 1 and pl.cdiv(B, n_tiles + 1) >= 256:
            tb_eff = _round_up(pl.cdiv(B, n_tiles + 1), 8)
            n_tiles = pl.cdiv(B, tb_eff)

    b1_2d = b1.reshape(1, D1)
    b2_2d = b2.reshape(1, D2)
    b3_2d = b3.reshape(1, D_out)

    # Advisory cost estimate so XLA schedules surrounding ops sensibly.
    flops = 2 * B * (D_in * D1 + D1 * D2 + D2 * D_out)
    bytes_accessed = x.dtype.itemsize * (B * D_in + B * D_out) + 4 * (
        D_in * D1 + D1 + D1 * D2 + D2 + D2 * D_out + D_out)

    precision = (lax.Precision.HIGHEST
                 if jnp.dtype(compute_dtype) == jnp.dtype(jnp.float32) else None)
    kernel = functools.partial(encoder_kernel,
                               compute_dtype=compute_dtype, precision=precision)

    return pl.pallas_call(
        kernel,
        out_shape=jax.ShapeDtypeStruct((B, D_out), x.dtype),
        grid_spec=pltpu.PrefetchScalarGridSpec(
            num_scalar_prefetch=0,
            grid=(n_tiles,),
            in_specs=[
                pl.BlockSpec((tb_eff, D_in), lambda i: (i, 0)),    # x tile (streamed)
                pl.BlockSpec((D_in, D1), lambda i: (0, 0)),        # W1 (VMEM-resident)
                pl.BlockSpec((1, D1), lambda i: (0, 0)),           # b1
                pl.BlockSpec((D1, D2), lambda i: (0, 0)),          # W2
                pl.BlockSpec((1, D2), lambda i: (0, 0)),           # b2
                pl.BlockSpec((D2, D_out), lambda i: (0, 0)),       # W3
                pl.BlockSpec((1, D_out), lambda i: (0, 0)),        # b3
            ],
            out_specs=pl.BlockSpec((tb_eff, D_out), lambda i: (i, 0)),
        ),
        compiler_params=pltpu.CompilerParams(
            dimension_semantics=("parallel",),
        ),
        cost_estimate=pl.CostEstimate(
            flops=flops, transcendentals=0, bytes_accessed=bytes_accessed),
    )(x, w1, b1_2d, w2, b2_2d, w3, b3_2d)


def _init_linear(key, in_f, out_f):
    # PyTorch nn.Linear default init: U(-1/sqrt(in_f), 1/sqrt(in_f)) for W and b.
    kw, kb = jax.random.split(key)
    bound = 1.0 / (in_f ** 0.5)
    # Store weight transposed vs. PyTorch: (in_f, out_f), so the kernel computes x @ W + b.
    w = jax.random.uniform(kw, (in_f, out_f), jnp.float32, -bound, bound)
    b = jax.random.uniform(kb, (out_f,), jnp.float32, -bound, bound)
    return w, b


def reference_forward(x, w1, b1, w2, b2, w3, b3, precision=None):
    h = jax.nn.leaky_relu(jnp.dot(x, w1, precision=precision) + b1, NEG_SLOPE)
    h = jax.nn.leaky_relu(jnp.dot(h, w2, precision=precision) + b2, NEG_SLOPE)
    return jax.nn.leaky_relu(jnp.dot(h, w3, precision=precision) + b3, NEG_SLOPE)


if __name__ == "__main__":
    key = jax.random.PRNGKey(0)
    kx, k1, k2, k3 = jax.random.split(key, 4)

    # Small test batch; production batches stream through 1024-row tiles automatically.
    B = 16
    x = jax.random.normal(kx, (B, 300), jnp.float32)

    w1, b1 = _init_linear(k1, 300, 256)
    w2, b2 = _init_linear(k2, 256, 128)
    w3, b3 = _init_linear(k3, 128, 32)

    ref = reference_forward(x, w1, b1, w2, b2, w3, b3,
                            precision=lax.Precision.HIGHEST)

    # Default fast path: bf16 MXU inputs, f32 accumulation.
    out_bf16 = jax.block_until_ready(encoder_forward(x, w1, b1, w2, b2, w3, b3))
    assert out_bf16.shape == (B, 32), out_bf16.shape
    assert jnp.allclose(out_bf16, ref, atol=2e-2, rtol=2e-2), "bf16 path mismatch"

    # Strict-parity path: f32 matmuls at HIGHEST precision, matches reference to 1e-5.
    out_f32 = jax.block_until_ready(
        encoder_forward(x, w1, b1, w2, b2, w3, b3, compute_dtype=jnp.float32))
    assert out_f32.shape == (B, 32), out_f32.shape
    assert jnp.allclose(out_f32, ref, atol=1e-5, rtol=1e-5), "f32 path mismatch"

    print("KERNEL_OK")
</pallas_src>

<mosaic_0001>
module attributes {stable_mosaic.version = 11 : i64} {
  func.func @encoder_kernel(%arg0: i32, %arg1: memref<16x300xf32, #tpu.memory_space<vmem>>, %arg2: memref<300x256xf32, #tpu.memory_space<vmem>>, %arg3: memref<1x256xf32, #tpu.memory_space<vmem>>, %arg4: memref<256x128xf32, #tpu.memory_space<vmem>>, %arg5: memref<1x128xf32, #tpu.memory_space<vmem>>, %arg6: memref<128x32xf32, #tpu.memory_space<vmem>>, %arg7: memref<1x32xf32, #tpu.memory_space<vmem>>, %arg8: memref<16x32xf32, #tpu.memory_space<vmem>>) attributes {dimension_semantics = [#tpu.dimension_semantics<parallel>], iteration_bounds = array<i64: 1>, scalar_prefetch = 0 : i64, scratch_operands = 0 : i64, tpu.core_type = #tpu.core_type<tc>, window_params = [{transform_indices = @transform_0, window_bounds = array<i64: 16, 300>}, {pipeline_mode = #tpu.pipeline_mode<synchronous>, transform_indices = @transform_1, window_bounds = array<i64: 300, 256>}, {pipeline_mode = #tpu.pipeline_mode<synchronous>, transform_indices = @transform_2, window_bounds = array<i64: 1, 256>}, {pipeline_mode = #tpu.pipeline_mode<synchronous>, transform_indices = @transform_3, window_bounds = array<i64: 256, 128>}, {pipeline_mode = #tpu.pipeline_mode<synchronous>, transform_indices = @transform_4, window_bounds = array<i64: 1, 128>}, {pipeline_mode = #tpu.pipeline_mode<synchronous>, transform_indices = @transform_5, window_bounds = array<i64: 128, 32>}, {pipeline_mode = #tpu.pipeline_mode<synchronous>, transform_indices = @transform_6, window_bounds = array<i64: 1, 32>}, {transform_indices = @transform_7, window_bounds = array<i64: 16, 32>}]} {
    %c0 = arith.constant 0 : index
    %c0_0 = arith.constant 0 : index
    %0 = vector.load %arg1[%c0, %c0_0] : memref<16x300xf32, #tpu.memory_space<vmem>>, vector<16x300xf32>
    %1 = arith.truncf %0 : vector<16x300xf32> to vector<16x300xbf16>
    %c0_1 = arith.constant 0 : index
    %c0_2 = arith.constant 0 : index
    %2 = vector.load %arg2[%c0_1, %c0_2] : memref<300x256xf32, #tpu.memory_space<vmem>>, vector<300x256xf32>
    %3 = arith.truncf %2 : vector<300x256xf32> to vector<300x256xbf16>
    %cst = arith.constant dense<0.000000e+00> : vector<16x256xf32>
    %4 = tpu.matmul %1, %3, %cst {dimension_numbers = #tpu.dot_dimension_numbers<[1], [0], [0], [1], [0, 0, 1, 1], [], []>} : vector<16x300xbf16>, vector<300x256xbf16>, vector<16x256xf32> -> vector<16x256xf32>
    %c0_3 = arith.constant 0 : index
    %c0_4 = arith.constant 0 : index
    %5 = vector.load %arg3[%c0_3, %c0_4] : memref<1x256xf32, #tpu.memory_space<vmem>>, vector<1x256xf32>
    %6 = vector.broadcast %5 : vector<1x256xf32> to vector<16x256xf32>
    %7 = arith.addf %4, %6 : vector<16x256xf32>
    %cst_5 = arith.constant 0.000000e+00 : f32
    %8 = vector.broadcast %cst_5 : f32 to vector<16x256xf32>
    %9 = arith.cmpf ogt, %7, %8 : vector<16x256xf32>
    %cst_6 = arith.constant 0.00999999977 : f32
    %10 = vector.broadcast %cst_6 : f32 to vector<16x256xf32>
    %11 = arith.mulf %10, %7 : vector<16x256xf32>
    %12 = arith.select %9, %7, %11 : vector<16x256xi1>, vector<16x256xf32>
    %13 = arith.truncf %12 : vector<16x256xf32> to vector<16x256xbf16>
    %c0_7 = arith.constant 0 : index
    %c0_8 = arith.constant 0 : index
    %14 = vector.load %arg4[%c0_7, %c0_8] : memref<256x128xf32, #tpu.memory_space<vmem>>, vector<256x128xf32>
    %15 = arith.truncf %14 : vector<256x128xf32> to vector<256x128xbf16>
    %cst_9 = arith.constant dense<0.000000e+00> : vector<16x128xf32>
    %16 = tpu.matmul %13, %15, %cst_9 {dimension_numbers = #tpu.dot_dimension_numbers<[1], [0], [0], [1], [0, 0, 1, 1], [], []>} : vector<16x256xbf16>, vector<256x128xbf16>, vector<16x128xf32> -> vector<16x128xf32>
    %c0_10 = arith.constant 0 : index
    %c0_11 = arith.constant 0 : index
    %17 = vector.load %arg5[%c0_10, %c0_11] : memref<1x128xf32, #tpu.memory_space<vmem>>, vector<1x128xf32>
    %18 = vector.broadcast %17 : vector<1x128xf32> to vector<16x128xf32>
    %19 = arith.addf %16, %18 : vector<16x128xf32>
    %cst_12 = arith.constant 0.000000e+00 : f32
    %20 = vector.broadcast %cst_12 : f32 to vector<16x128xf32>
    %21 = arith.cmpf ogt, %19, %20 : vector<16x128xf32>
    %cst_13 = arith.constant 0.00999999977 : f32
    %22 = vector.broadcast %cst_13 : f32 to vector<16x128xf32>
    %23 = arith.mulf %22, %19 : vector<16x128xf32>
    %24 = arith.select %21, %19, %23 : vector<16x128xi1>, vector<16x128xf32>
    %25 = arith.truncf %24 : vector<16x128xf32> to vector<16x128xbf16>
    %c0_14 = arith.constant 0 : index
    %c0_15 = arith.constant 0 : index
    %26 = vector.load %arg6[%c0_14, %c0_15] : memref<128x32xf32, #tpu.memory_space<vmem>>, vector<128x32xf32>
    %27 = arith.truncf %26 : vector<128x32xf32> to vector<128x32xbf16>
    %cst_16 = arith.constant dense<0.000000e+00> : vector<16x32xf32>
    %28 = tpu.matmul %25, %27, %cst_16 {dimension_numbers = #tpu.dot_dimension_numbers<[1], [0], [0], [1], [0, 0, 1, 1], [], []>} : vector<16x128xbf16>, vector<128x32xbf16>, vector<16x32xf32> -> vector<16x32xf32>
    %c0_17 = arith.constant 0 : index
    %c0_18 = arith.constant 0 : index
    %29 = vector.load %arg7[%c0_17, %c0_18] : memref<1x32xf32, #tpu.memory_space<vmem>>, vector<1x32xf32>
    %30 = vector.broadcast %29 : vector<1x32xf32> to vector<16x32xf32>
    %31 = arith.addf %28, %30 : vector<16x32xf32>
    %cst_19 = arith.constant 0.000000e+00 : f32
    %32 = vector.broadcast %cst_19 : f32 to vector<16x32xf32>
    %33 = arith.cmpf ogt, %31, %32 : vector<16x32xf32>
    %cst_20 = arith.constant 0.00999999977 : f32
    %34 = vector.broadcast %cst_20 : f32 to vector<16x32xf32>
    %35 = arith.mulf %34, %31 : vector<16x32xf32>
    %36 = arith.select %33, %31, %35 : vector<16x32xi1>, vector<16x32xf32>
    %c0_21 = arith.constant 0 : index
    %c0_22 = arith.constant 0 : index
    %37 = vector.load %arg8[%c0_21, %c0_22] : memref<16x32xf32, #tpu.memory_space<vmem>>, vector<16x32xf32>
    tpu.vector_store %arg8[%c0_21, %c0_22], %36 {strides = array<i32>} : memref<16x32xf32, #tpu.memory_space<vmem>>, vector<16x32xf32>,
    return
  }
  func.func @transform_0(%arg0: i32) -> (i32, i32) {
    %c0_i32 = arith.constant 0 : i32
    %c0_i32_0 = arith.constant 0 : i32
    return %arg0, %c0_i32 : i32, i32
  }
  func.func @transform_1(%arg0: i32) -> (i32, i32) {
    %c0_i32 = arith.constant 0 : i32
    %c0_i32_0 = arith.constant 0 : i32
    %c0_i32_1 = arith.constant 0 : i32
    return %c0_i32, %c0_i32_0 : i32, i32
  }
  func.func @transform_2(%arg0: i32) -> (i32, i32) {
    %c0_i32 = arith.constant 0 : i32
    %c0_i32_0 = arith.constant 0 : i32
    %c0_i32_1 = arith.constant 0 : i32
    return %c0_i32, %c0_i32_0 : i32, i32
  }
  func.func @transform_3(%arg0: i32) -> (i32, i32) {
    %c0_i32 = arith.constant 0 : i32
    %c0_i32_0 = arith.constant 0 : i32
    %c0_i32_1 = arith.constant 0 : i32
    return %c0_i32, %c0_i32_0 : i32, i32
  }
  func.func @transform_4(%arg0: i32) -> (i32, i32) {
    %c0_i32 = arith.constant 0 : i32
    %c0_i32_0 = arith.constant 0 : i32
    %c0_i32_1 = arith.constant 0 : i32
    return %c0_i32, %c0_i32_0 : i32, i32
  }
  func.func @transform_5(%arg0: i32) -> (i32, i32) {
    %c0_i32 = arith.constant 0 : i32
    %c0_i32_0 = arith.constant 0 : i32
    %c0_i32_1 = arith.constant 0 : i32
    return %c0_i32, %c0_i32_0 : i32, i32
  }
  func.func @transform_6(%arg0: i32) -> (i32, i32) {
    %c0_i32 = arith.constant 0 : i32
    %c0_i32_0 = arith.constant 0 : i32
    %c0_i32_1 = arith.constant 0 : i32
    return %c0_i32, %c0_i32_0 : i32, i32
  }
  func.func @transform_7(%arg0: i32) -> (i32, i32) {
    %c0_i32 = arith.constant 0 : i32
    %c0_i32_0 = arith.constant 0 : i32
    return %arg0, %c0_i32 : i32, i32
  }
}

</mosaic_0001>

<llo_original>
// kernel: encoder_forward.1
$region0: #{encoder_forward.1}
  #allocation0 [shape = 'u32[]', space=smem, size = 0x4, offset = 0x4, fixed_abs, tag = 'smem constant byte address 0x4 - core index']
  #allocation1 [shape = 'u32[144,128]{1,0:T(1,128)}', space=vmem, size = 0x12000, scoped, tag = 'internal scratch']
  %s0 = inlined_call_operand.vmem [shape: f32[16,300], index: 0, kind: input, shape index: {}]
  %s1 = inlined_call_operand.hbm [shape: f32[300,256], index: 1, kind: input, shape index: {}]
  %s2 = inlined_call_operand.vmem [shape: f32[1,256], index: 2, kind: input, shape index: {}]
  %s3 = inlined_call_operand.hbm [shape: f32[256,128], index: 3, kind: input, shape index: {}]
  %s4 = inlined_call_operand.vmem [shape: f32[1,128], index: 4, kind: input, shape index: {}]
  %s5 = inlined_call_operand.vmem [shape: f32[128,32], index: 5, kind: input, shape index: {}]
  %s6 = inlined_call_operand.vmem [shape: f32[1,32], index: 6, kind: input, shape index: {}]
  %s7 = inlined_call_operand.hbm [shape: f32[16,32], index: 7, kind: output, shape index: {}]
  %s8 = sld [smem:[#allocation0]]
  $region46: #{encoder_forward.1} parent=0
    _
  %s10 = ssub.s32 1, %s8
  %s11 = scalar_select 0, %s10, %s8
  $region1: #{encoder_forward.1} parent=0
    #allocation2 [shape = 'u8[311296]{0}', space=vmem, size = 0x4c000, scoped, tag = 'input window, operand 1, single buffered']
    #allocation3 [shape = 's32[1]{0}', space=sflag, size = 0x4, scoped, tag = 'scoped memory for encoder_forward.1']
    #allocation4 [shape = 's32[1]{0}', space=sflag, size = 0x4, scoped, tag = 'scoped memory for encoder_forward.1']
    #allocation5 [shape = 'u8[131072]{0}', space=vmem, size = 0x20000, scoped, tag = 'input window, operand 3, single buffered']
    #allocation6 [shape = 's32[1]{0}', space=sflag, size = 0x4, scoped, tag = 'scoped memory for encoder_forward.1']
    #allocation7 [shape = 'u8[8192]{0}', space=vmem, size = 0x2000, scoped, tag = 'output window, operand 0, single buffered']
    %12 = vsyncpa [#allocation3], 0
    %13 = vsyncpa [#allocation6], 0
    %14 = vsyncpa [#allocation4], 0
    // Predicated region
    $region2: #{encoder_forward.1} parent=1 // pred_check
      _
    $region3: #{encoder_forward.1} parent=1 // pred_check_branch
      %16 = sbr.rel (0) target = $region5
    $region4: #{encoder_forward.1} parent=1 // pred_region
      _
    $region5: #{encoder_forward.1} parent=1 // pred_fallthru
      _
    // Predicated region
    $region6: #{encoder_forward.1} parent=1 // pred_check
      _
    $region7: #{encoder_forward.1} parent=1 // pred_check_branch
      %18 = sbr.rel (0) target = $region9
    $region8: #{encoder_forward.1} parent=1 // pred_region
      %s20 = ssub.s32 9728, 9728
      %21 = vsyncadd [#allocation3], %s20
      %s22 = sshll.u32 [#allocation2], 4
      %s23 = int_to_ptr.vmem [resolvable:$true] %s22
      %28 = dma.hbm_to_vmem [thread:$0]  %s1, 9728, %s23, [#allocation3], 256, 256, 16
    $region9: #{encoder_forward.1} parent=1 // pred_fallthru
      _
    // Predicated region
    $region10: #{encoder_forward.1} parent=1 // pred_check
      _
    $region11: #{encoder_forward.1} parent=1 // pred_check_branch
      %30 = sbr.rel (0) target = $region13
    $region12: #{encoder_forward.1} parent=1 // pred_region
      _
    $region13: #{encoder_forward.1} parent=1 // pred_fallthru
      _
    // Predicated region
    $region14: #{encoder_forward.1} parent=1 // pred_check
      _
    $region15: #{encoder_forward.1} parent=1 // pred_check_branch
      %32 = sbr.rel (0) target = $region17
    $region16: #{encoder_forward.1} parent=1 // pred_region
      %s34 = ssub.s32 4096, 4096
      %35 = vsyncadd [#allocation6], %s34
      %s36 = sshll.u32 [#allocation5], 4
      %s37 = int_to_ptr.vmem [resolvable:$true] %s36
      %42 = dma.hbm_to_vmem [thread:$0]  %s3, 4096, %s37, [#allocation6], 128, 128, 8
    $region17: #{encoder_forward.1} parent=1 // pred_fallthru
      _
    // Predicated region
    $region18: #{encoder_forward.1} parent=1 // pred_check
      _
    $region19: #{encoder_forward.1} parent=1 // pred_check_branch
      %44 = sbr.rel (0) target = $region21
    $region20: #{encoder_forward.1} parent=1 // pred_region
      _
    $region21: #{encoder_forward.1} parent=1 // pred_fallthru
      _
    // Predicated region
    $region22: #{encoder_forward.1} parent=1 // pred_check
      _
    $region23: #{encoder_forward.1} parent=1 // pred_check_branch
      %46 = sbr.rel (0) target = $region25
    $region24: #{encoder_forward.1} parent=1 // pred_region
      _
    $region25: #{encoder_forward.1} parent=1 // pred_fallthru
      _
    // Predicated region
    $region26: #{encoder_forward.1} parent=1 // pred_check
      _
    $region27: #{encoder_forward.1} parent=1 // pred_check_branch
      %48 = sbr.rel (0) target = $region29
    $region28: #{encoder_forward.1} parent=1 // pred_region
      _
    $region29: #{encoder_forward.1} parent=1 // pred_fallthru
      _
    // Predicated region
    $region30: #{encoder_forward.1} parent=1 // pred_check
      _
    $region31: #{encoder_forward.1} parent=1 // pred_check_branch
      %50 = sbr.rel (0) target = $region33
    $region32: #{encoder_forward.1} parent=1 // pred_region
      %51 = dma.done [#allocation3], 9728
    $region33: #{encoder_forward.1} parent=1 // pred_fallthru
      _
    // Predicated region
    $region34: #{encoder_forward.1} parent=1 // pred_check
      _
    $region35: #{encoder_forward.1} parent=1 // pred_check_branch
      %53 = sbr.rel (0) target = $region37
    $region36: #{encoder_forward.1} parent=1 // pred_region
      %54 = dma.done [#allocation6], 4096
    $region37: #{encoder_forward.1} parent=1 // pred_fallthru
      _
    %v56 = vld [vmem:[%s0] sm:$0xff]
    %v57 = vld [vmem:[%s0 + $0x8] sm:$0xff]
    %v58 = vld [vmem:[%s0 + $0x10] sm:$0xff]
    %v59 = vld [vmem:[%s0 + $0x18] sm:$0xff]
    %v60 = vld [vmem:[%s0 + $0x20] sm:$0xff]
    %v61 = vld [vmem:[%s0 + $0x28] sm:$0xff]
    %v62 = vpack.c.bf16 %v59, %v56
    %v63 = vpack.c.bf16 %v60, %v57
    %v64 = vpack.c.bf16 %v61, %v58
    %v65 = vld [vmem:[#allocation2] sm:$0xff]
    %v66 = vld [vmem:[#allocation2 + $0x8] sm:$0xff]
    %v67 = vld [vmem:[#allocation2 + $0x10] sm:$0xff]
    %v68 = vld [vmem:[#allocation2 + $0x18] sm:$0xff]
    %v69 = vld [vmem:[#allocation2 + $0x20] sm:$0xff]
    %v70 = vld [vmem:[#allocation2 + $0x28] sm:$0xff]
    %v71 = vld [vmem:[#allocation2 + $0x30] sm:$0xff]
    %v72 = vld [vmem:[#allocation2 + $0x38] sm:$0xff]
    %v73 = vld [vmem:[#allocation2 + $0x40] sm:$0xff]
    %v74 = vld [vmem:[#allocation2 + $0x48] sm:$0xff]
    %v75 = vld [vmem:[#allocation2 + $0x50] sm:$0xff]
    %v76 = vld [vmem:[#allocation2 + $0x58] sm:$0xff]
    %v77 = vld [vmem:[#allocation2 + $0x60] sm:$0xff]
    %v78 = vld [vmem:[#allocation2 + $0x68] sm:$0xff]
    %v79 = vld [vmem:[#allocation2 + $0x70] sm:$0xff]
    %v80 = vld [vmem:[#allocation2 + $0x78] sm:$0xff]
    %v81 = vld [vmem:[#allocation2 + $0x80] sm:$0xff]
    %v82 = vld [vmem:[#allocation2 + $0x88] sm:$0xff]
    %v83 = vld [vmem:[#allocation2 + $0x90] sm:$0xff]
    %v84 = vld [vmem:[#allocation2 + $0x98] sm:$0xff]
    %v85 = vld [vmem:[#allocation2 + $0xa0] sm:$0xff]
    %v86 = vld [vmem:[#allocation2 + $0xa8] sm:$0xff]
    %v87 = vld [vmem:[#allocation2 + $0xb0] sm:$0xff]
    %v88 = vld [vmem:[#allocation2 + $0xb8] sm:$0xff]
    %v89 = vld [vmem:[#allocation2 + $0xc0] sm:$0xff]
    %v90 = vld [vmem:[#allocation2 + $0xc8] sm:$0xff]
    %v91 = vld [vmem:[#allocation2 + $0xd0] sm:$0xff]
    %v92 = vld [vmem:[#allocation2 + $0xd8] sm:$0xff]
    %v93 = vld [vmem:[#allocation2 + $0xe0] sm:$0xff]
    %v94 = vld [vmem:[#allocation2 + $0xe8] sm:$0xff]
    %v95 = vld [vmem:[#allocation2 + $0xf0] sm:$0xff]
    %v96 = vld [vmem:[#allocation2 + $0xf8] sm:$0xff]
    %v97 = vld [vmem:[#allocation2 + $0x100] sm:$0xff]
    %v98 = vld [vmem:[#allocation2 + $0x108] sm:$0xff]
    %v99 = vld [vmem:[#allocation2 + $0x110] sm:$0xff]
    %v100 = vld [vmem:[#allocation2 + $0x118] sm:$0xff]
    %v101 = vld [vmem:[#allocation2 + $0x120] sm:$0xff]
    %v102 = vld [vmem:[#allocation2 + $0x128] sm:$0xff]
    %v103 = vld [vmem:[#allocation2 + $0x130] sm:$0xff]
    %v104 = vld [vmem:[#allocation2 + $0x138] sm:$0xff]
    %v105 = vld [vmem:[#allocation2 + $0x140] sm:$0xff]
    %v106 = vld [vmem:[#allocation2 + $0x148] sm:$0xff]
    %v107 = vld [vmem:[#allocation2 + $0x150] sm:$0xff]
    %v108 = vld [vmem:[#allocation2 + $0x158] sm:$0xff]
    %v109 = vld [vmem:[#allocation2 + $0x160] sm:$0xff]
    %v110 = vld [vmem:[#allocation2 + $0x168] sm:$0xff]
    %v111 = vld [vmem:[#allocation2 + $0x170] sm:$0xff]
    %v112 = vld [vmem:[#allocation2 + $0x178] sm:$0xff]
    %v113 = vld [vmem:[#allocation2 + $0x180] sm:$0xff]
    %v114 = vld [vmem:[#allocation2 + $0x188] sm:$0xff]
    %v115 = vld [vmem:[#allocation2 + $0x190] sm:$0xff]
    %v116 = vld [vmem:[#allocation2 + $0x198] sm:$0xff]
    %v117 = vld [vmem:[#allocation2 + $0x1a0] sm:$0xff]
    %v118 = vld [vmem:[#allocation2 + $0x1a8] sm:$0xff]
    %v119 = vld [vmem:[#allocation2 + $0x1b0] sm:$0xff]
    %v120 = vld [vmem:[#allocation2 + $0x1b8] sm:$0xff]
    %v121 = vld [vmem:[#allocation2 + $0x1c0] sm:$0xff]
    %v122 = vld [vmem:[#allocation2 + $0x1c8] sm:$0xff]
    %v123 = vld [vmem:[#allocation2 + $0x1d0] sm:$0xff]
    %v124 = vld [vmem:[#allocation2 + $0x1d8] sm:$0xff]
    %v125 = vld [vmem:[#allocation2 + $0x1e0] sm:$0xff]
    %v126 = vld [vmem:[#allocation2 + $0x1e8] sm:$0xff]
    %v127 = vld [vmem:[#allocation2 + $0x1f0] sm:$0xff]
    %v128 = vld [vmem:[#allocation2 + $0x1f8] sm:$0xff]
    %v129 = vld [vmem:[#allocation2 + $0x200] sm:$0xff]
    %v130 = vld [vmem:[#allocation2 + $0x208] sm:$0xff]
    %v131 = vld [vmem:[#allocation2 + $0x210] sm:$0xff]
    %v132 = vld [vmem:[#allocation2 + $0x218] sm:$0xff]
    %v133 = vld [vmem:[#allocation2 + $0x220] sm:$0xff]
    %v134 = vld [vmem:[#allocation2 + $0x228] sm:$0xff]
    %v135 = vld [vmem:[#allocation2 + $0x230] sm:$0xff]
    %v136 = vld [vmem:[#allocation2 + $0x238] sm:$0xff]
    %v137 = vld [vmem:[#allocation2 + $0x240] sm:$0xff]
    %v138 = vld [vmem:[#allocation2 + $0x248] sm:$0xff]
    %v139 = vld [vmem:[#allocation2 + $0x250] sm:$0xf]
    %v140 = vld [vmem:[#allocation2 + $0x258] sm:$0xf]
    %v141 = vpack.c.bf16 %v67, %v65
    %v142 = vpack.c.bf16 %v68, %v66
    %v143 = vpack.c.bf16 %v71, %v69
    %v144 = vpack.c.bf16 %v72, %v70
    %v145 = vpack.c.bf16 %v75, %v73
    %v146 = vpack.c.bf16 %v76, %v74
    %v147 = vpack.c.bf16 %v79, %v77
    %v148 = vpack.c.bf16 %v80, %v78
    %v149 = vpack.c.bf16 %v83, %v81
    %v150 = vpack.c.bf16 %v84, %v82
    %v151 = vpack.c.bf16 %v87, %v85
    %v152 = vpack.c.bf16 %v88, %v86
    %v153 = vpack.c.bf16 %v91, %v89
    %v154 = vpack.c.bf16 %v92, %v90
    %v155 = vpack.c.bf16 %v95, %v93
    %v156 = vpack.c.bf16 %v96, %v94
    %v157 = vpack.c.bf16 %v99, %v97
    %v158 = vpack.c.bf16 %v100, %v98
    %v159 = vpack.c.bf16 %v103, %v101
    %v160 = vpack.c.bf16 %v104, %v102
    %v161 = vpack.c.bf16 %v107, %v105
    %v162 = vpack.c.bf16 %v108, %v106
    %v163 = vpack.c.bf16 %v111, %v109
    %v164 = vpack.c.bf16 %v112, %v110
    %v165 = vpack.c.bf16 %v115, %v113
    %v166 = vpack.c.bf16 %v116, %v114
    %v167 = vpack.c.bf16 %v119, %v117
    %v168 = vpack.c.bf16 %v120, %v118
    %v169 = vpack.c.bf16 %v123, %v121
    %v170 = vpack.c.bf16 %v124, %v122
    %v171 = vpack.c.bf16 %v127, %v125
    %v172 = vpack.c.bf16 %v128, %v126
    %v173 = vpack.c.bf16 %v131, %v129
    %v174 = vpack.c.bf16 %v132, %v130
    %v175 = vpack.c.bf16 %v135, %v133
    %v176 = vpack.c.bf16 %v136, %v134
    %v177 = vpack.c.bf16 %v139, %v137
    %v178 = vpack.c.bf16 %v140, %v138
    %v179 = vld [vmem:[%s2] sm:$0x3]
    %v181 = vlaneseq
    %v182 = vshrl.u32 %v181, 7
    %v183 = vsub.s32 0, %v182
    %v184 = vrot.slane %v179, %v183
    %v185 = vlaneseq
    %v186 = vshrl.u32 %v185, 7
    %v187 = vsub.s32 1, %v186
    %v188 = vrot.slane %v179, %v187
    %vm191 = vcmask 359424
    %v193 = vsel %vm191, %v64, 0
    %vm195 = vcmask 1045504
    %v197 = vsel %vm195, %v177, 0
    %v200 = vsel %vm195, %v178, 0
    %202 = vmatprep.subr.bf16.mxu0 %v142
    %203 = vmatpush1.bf16.msra.mxu0 %v141
    %204 = vmatprep.subr.bf16.mxu0 %v144
    %205 = vmatpush1.bf16.msra.mxu0 %v143
    %206 = vmatprep.subr.bf16.mxu0 %v146
    %207 = vmatpush1.bf16.msra.mxu0 %v145
    %208 = vmatprep.subr.bf16.mxu0 %v148
    %209 = vmatpush1.bf16.msra.mxu0 %v147
    %210 = vmatprep.subr.bf16.mxu0 %v150
    %211 = vmatpush1.bf16.msra.mxu0 %v149
    %212 = vmatprep.subr.bf16.mxu0 %v152
    %213 = vmatpush1.bf16.msra.mxu0 %v151
    %214 = vmatprep.subr.bf16.mxu0 %v154
    %215 = vmatpush1.bf16.msra.mxu0 %v153
    %216 = vmatprep.subr.bf16.mxu0 %v156
    %217 = vmatpush1.bf16.msra.mxu0 %v155
    %218 = vmatprep.subr.bf16.mxu0 %v158
    %219 = vmatpush1.bf16.msra.mxu0 %v157
    %220 = vmatprep.subr.bf16.mxu0 %v160
    %221 = vmatpush1.bf16.msra.mxu0 %v159
    %222 = vmatprep.subr.bf16.mxu0 %v162
    %223 = vmatpush1.bf16.msra.mxu0 %v161
    %224 = vmatprep.subr.bf16.mxu0 %v164
    %225 = vmatpush1.bf16.msra.mxu0 %v163
    %226 = vmatprep.subr.bf16.mxu0 %v166
    %227 = vmatpush1.bf16.msra.mxu0 %v165
    %228 = vmatprep.subr.bf16.mxu0 %v168
    %229 = vmatpush1.bf16.msra.mxu0 %v167
    %230 = vmatprep.subr.bf16.mxu0 %v170
    %231 = vmatpush1.bf16.msra.mxu0 %v169
    %232 = vmatprep.subr.bf16.mxu0 %v172
    %233 = vmatpush1.bf16.msra.mxu0 %v171
    %234 = vmatprep.mubr.bf16.mxu0 %v63
    %235 = vmatmul.mubr.bf16.gmra.mrb[0].mxu0 %v62
    %v236 = vpop.f32.mrb[0].mxu0
    %v237 = vadd.f32 %v184, %v236
    %v238 = vpop.f32.mrb[0].mxu0
    %v239 = vadd.f32 %v188, %v238
    %v240 = vpop.f32.mrb[0].mxu0
    %v241 = vadd.f32 %v184, %v240
    %v242 = vpop.f32.mrb[0].mxu0
    %v243 = vadd.f32 %v188, %v242
    %244 = vdwg.mxu0
    %245 = vmatprep.subr.bf16.mxu0 %v174
    %246 = vmatpush1.bf16.msra.mxu0 %v173
    %247 = vmatprep.subr.bf16.mxu0 %v176
    %248 = vmatpush1.bf16.msra.mxu0 %v175
    %249 = vmatprep.subr.bf16.mxu0 %v200
    %250 = vmatpush1.bf16.msra.mxu0 %v197
    %251 = vmatprep.subr.bf16.mxu0 0
    %252 = vmatpush1.bf16.msra.mxu0 0
    %253 = vmatprep.subr.bf16.mxu0 0
    %254 = vmatpush1.bf16.msra.mxu0 0
    %255 = vmatprep.subr.bf16.mxu0 0
    %256 = vmatpush1.bf16.msra.mxu0 0
    %257 = vmatprep.subr.bf16.mxu0 0
    %258 = vmatpush1.bf16.msra.mxu0 0
    %259 = vmatprep.subr.bf16.mxu0 0
    %260 = vmatpush1.bf16.msra.mxu0 0
    %261 = vmatprep.subr.bf16.mxu0 0
    %262 = vmatpush1.bf16.msra.mxu0 0
    %263 = vmatprep.subr.bf16.mxu0 0
    %264 = vmatpush1.bf16.msra.mxu0 0
    %265 = vmatprep.subr.bf16.mxu0 0
    %266 = vmatpush1.bf16.msra.mxu0 0
    %267 = vmatprep.subr.bf16.mxu0 0
    %268 = vmatpush1.bf16.msra.mxu0 0
    %269 = vmatprep.subr.bf16.mxu0 0
    %270 = vmatpush1.bf16.msra.mxu0 0
    %271 = vmatprep.subr.bf16.mxu0 0
    %272 = vmatpush1.bf16.msra.mxu0 0
    %273 = vmatprep.subr.bf16.mxu0 0
    %274 = vmatpush1.bf16.msra.mxu0 0
    %275 = vmatprep.subr.bf16.mxu0 0
    %276 = vmatpush1.bf16.msra.mxu0 0
    %277 = vmatprep.mubr.bf16.mxu0 0
    %278 = vmatmul.mubr.bf16.gmra.mrb[0].mxu0 %v193
    %v279 = vpop.f32.mrb[0].mxu0
    %v280 = vadd.f32 %v237, %v279
    %v281 = vpop.f32.mrb[0].mxu0
    %v282 = vadd.f32 %v239, %v281
    %v283 = vpop.f32.mrb[0].mxu0
    %v284 = vadd.f32 %v241, %v283
    %v285 = vpop.f32.mrb[0].mxu0
    %v286 = vadd.f32 %v243, %v285
    %287 = vdwg.mxu0
    %vm288 = vcmp.gt.f32.partialorder %v280, 0.0
    %vm289 = vcmp.gt.f32.partialorder %v282, 0.0
    %vm290 = vcmp.gt.f32.partialorder %v284, 0.0
    %vm291 = vcmp.gt.f32.partialorder %v286, 0.0
    %v292 = vmul.f32 %v280, 0.01
    %v293 = vmul.f32 %v282, 0.01
    %v294 = vmul.f32 %v284, 0.01
    %v295 = vmul.f32 %v286, 0.01
    %v296 = vsel %vm288, %v280, %v292
    %v297 = vsel %vm289, %v282, %v293
    %v298 = vsel %vm290, %v284, %v294
    %v299 = vsel %vm291, %v286, %v295
    %v300 = vpack.c.bf16 %v298, %v296
    %v301 = vpack.c.bf16 %v299, %v297
    %v302 = vld [vmem:[#allocation5] sm:$0xff]
    %v303 = vld [vmem:[#allocation5 + $0x8] sm:$0xff]
    %v304 = vld [vmem:[#allocation5 + $0x10] sm:$0xff]
    %v305 = vld [vmem:[#allocation5 + $0x18] sm:$0xff]
    %v306 = vld [vmem:[#allocation5 + $0x20] sm:$0xff]
    %v307 = vld [vmem:[#allocation5 + $0x28] sm:$0xff]
    %v308 = vld [vmem:[#allocation5 + $0x30] sm:$0xff]
    %v309 = vld [vmem:[#allocation5 + $0x38] sm:$0xff]
    %v310 = vld [vmem:[#allocation5 + $0x40] sm:$0xff]
    %v311 = vld [vmem:[#allocation5 + $0x48] sm:$0xff]
    %v312 = vld [vmem:[#allocation5 + $0x50] sm:$0xff]
    %v313 = vld [vmem:[#allocation5 + $0x58] sm:$0xff]
    %v314 = vld [vmem:[#allocation5 + $0x60] sm:$0xff]
    %v315 = vld [vmem:[#allocation5 + $0x68] sm:$0xff]
    %v316 = vld [vmem:[#allocation5 + $0x70] sm:$0xff]
    %v317 = vld [vmem:[#allocation5 + $0x78] sm:$0xff]
    %v318 = vld [vmem:[#allocation5 + $0x80] sm:$0xff]
    %v319 = vld [vmem:[#allocation5 + $0x88] sm:$0xff]
    %v320 = vld [vmem:[#allocation5 + $0x90] sm:$0xff]
    %v321 = vld [vmem:[#allocation5 + $0x98] sm:$0xff]
    %v322 = vld [vmem:[#allocation5 + $0xa0] sm:$0xff]
    %v323 = vld [vmem:[#allocation5 + $0xa8] sm:$0xff]
    %v324 = vld [vmem:[#allocation5 + $0xb0] sm:$0xff]
    %v325 = vld [vmem:[#allocation5 + $0xb8] sm:$0xff]
    %v326 = vld [vmem:[#allocation5 + $0xc0] sm:$0xff]
    %v327 = vld [vmem:[#allocation5 + $0xc8] sm:$0xff]
    %v328 = vld [vmem:[#allocation5 + $0xd0] sm:$0xff]
    %v329 = vld [vmem:[#allocation5 + $0xd8] sm:$0xff]
    %v330 = vld [vmem:[#allocation5 + $0xe0] sm:$0xff]
    %v331 = vld [vmem:[#allocation5 + $0xe8] sm:$0xff]
    %v332 = vld [vmem:[#allocation5 + $0xf0] sm:$0xff]
    %v333 = vld [vmem:[#allocation5 + $0xf8] sm:$0xff]
    %v334 = vpack.c.bf16 %v303, %v302
    %v335 = vpack.c.bf16 %v305, %v304
    %v336 = vpack.c.bf16 %v307, %v306
    %v337 = vpack.c.bf16 %v309, %v308
    %v338 = vpack.c.bf16 %v311, %v310
    %v339 = vpack.c.bf16 %v313, %v312
    %v340 = vpack.c.bf16 %v315, %v314
    %v341 = vpack.c.bf16 %v317, %v316
    %v342 = vpack.c.bf16 %v319, %v318
    %v343 = vpack.c.bf16 %v321, %v320
    %v344 = vpack.c.bf16 %v323, %v322
    %v345 = vpack.c.bf16 %v325, %v324
    %v346 = vpack.c.bf16 %v327, %v326
    %v347 = vpack.c.bf16 %v329, %v328
    %v348 = vpack.c.bf16 %v331, %v330
    %v349 = vpack.c.bf16 %v333, %v332
    %v350 = vld [vmem:[%s4] sm:$0x1]
    %v352 = vlaneseq
    %v353 = vshrl.u32 %v352, 7
    %v354 = vsub.s32 0, %v353
    %v355 = vrot.slane %v350, %v354
    %357 = vmatprep.subr.bf16.mxu0 0
    %358 = vmatpush1.bf16.msra.mxu0 %v334
    %359 = vmatprep.subr.bf16.mxu0 0
    %360 = vmatpush1.bf16.msra.mxu0 %v335
    %361 = vmatprep.subr.bf16.mxu0 0
    %362 = vmatpush1.bf16.msra.mxu0 %v336
    %363 = vmatprep.subr.bf16.mxu0 0
    %364 = vmatpush1.bf16.msra.mxu0 %v337
    %365 = vmatprep.subr.bf16.mxu0 0
    %366 = vmatpush1.bf16.msra.mxu0 %v338
    %367 = vmatprep.subr.bf16.mxu0 0
    %368 = vmatpush1.bf16.msra.mxu0 %v339
    %369 = vmatprep.subr.bf16.mxu0 0
    %370 = vmatpush1.bf16.msra.mxu0 %v340
    %371 = vmatprep.subr.bf16.mxu0 0
    %372 = vmatpush1.bf16.msra.mxu0 %v341
    %373 = vmatprep.subr.bf16.mxu0 0
    %374 = vmatpush1.bf16.msra.mxu0 %v342
    %375 = vmatprep.subr.bf16.mxu0 0
    %376 = vmatpush1.bf16.msra.mxu0 %v343
    %377 = vmatprep.subr.bf16.mxu0 0
    %378 = vmatpush1.bf16.msra.mxu0 %v344
    %379 = vmatprep.subr.bf16.mxu0 0
    %380 = vmatpush1.bf16.msra.mxu0 %v345
    %381 = vmatprep.subr.bf16.mxu0 0
    %382 = vmatpush1.bf16.msra.mxu0 %v346
    %383 = vmatprep.subr.bf16.mxu0 0
    %384 = vmatpush1.bf16.msra.mxu0 %v347
    %385 = vmatprep.subr.bf16.mxu0 0
    %386 = vmatpush1.bf16.msra.mxu0 %v348
    %387 = vmatprep.subr.bf16.mxu0 0
    %388 = vmatpush1.bf16.msra.mxu0 %v349
    %389 = vmatprep.mubr.bf16.mxu0 %v301
    %390 = vmatmul.mubr.bf16.gmra.mrb[0].mxu0 %v300
    %v391 = vpop.f32.mrb[0].mxu0
    %v392 = vadd.f32 %v355, %v391
    %v393 = vpop.f32.mrb[0].mxu0
    %v394 = vpop.f32.mrb[0].mxu0
    %v395 = vadd.f32 %v355, %v394
    %v396 = vpop.f32.mrb[0].mxu0
    %397 = vdwg.mxu0
    %vm398 = vcmp.gt.f32.partialorder %v392, 0.0
    %vm399 = vcmp.gt.f32.partialorder %v395, 0.0
    %v400 = vmul.f32 %v392, 0.01
    %v401 = vmul.f32 %v395, 0.01
    %v402 = vsel %vm398, %v392, %v400
    %v403 = vsel %vm399, %v395, %v401
    %v404 = vpack.c.bf16 %v403, %v402
    %v405 = vld [vmem:[%s5] sm:$0xff]
    %v406 = vld [vmem:[%s5 + $0x8] sm:$0xff]
    %v407 = vld [vmem:[%s5 + $0x10] sm:$0xff]
    %v408 = vld [vmem:[%s5 + $0x18] sm:$0xff]
    %v409 = vld [vmem:[%s5 + $0x20] sm:$0xff]
    %v410 = vld [vmem:[%s5 + $0x28] sm:$0xff]
    %v411 = vld [vmem:[%s5 + $0x30] sm:$0xff]
    %v412 = vld [vmem:[%s5 + $0x38] sm:$0xff]
    %v413 = vld [vmem:[%s5 + $0x40] sm:$0xff]
    %v414 = vld [vmem:[%s5 + $0x48] sm:$0xff]
    %v415 = vld [vmem:[%s5 + $0x50] sm:$0xff]
    %v416 = vld [vmem:[%s5 + $0x58] sm:$0xff]
    %v417 = vld [vmem:[%s5 + $0x60] sm:$0xff]
    %v418 = vld [vmem:[%s5 + $0x68] sm:$0xff]
    %v419 = vld [vmem:[%s5 + $0x70] sm:$0xff]
    %v420 = vld [vmem:[%s5 + $0x78] sm:$0xff]
    %v421 = vpack.c.bf16 %v406, %v405
    %v422 = vpack.c.bf16 %v408, %v407
    %v423 = vpack.c.bf16 %v410, %v409
    %v424 = vpack.c.bf16 %v412, %v411
    %v425 = vpack.c.bf16 %v414, %v413
    %v426 = vpack.c.bf16 %v416, %v415
    %v427 = vpack.c.bf16 %v418, %v417
    %v428 = vpack.c.bf16 %v420, %v419
    %v429 = vld [vmem:[%s6] sm:$0x1]
    %v431 = vlaneseq
    %v432 = vshrl.u32 %v431, 7
    %v433 = vsub.s32 0, %v432
    %v434 = vrot.slane %v429, %v433
    %436 = vmatprep.subr.bf16.mxu0 0
    %437 = vmatpush1.bf16.msra.mxu0 %v421
    %438 = vmatprep.subr.bf16.mxu0 0
    %439 = vmatpush1.bf16.msra.mxu0 %v422
    %440 = vmatprep.subr.bf16.mxu0 0
    %441 = vmatpush1.bf16.msra.mxu0 %v423
    %442 = vmatprep.subr.bf16.mxu0 0
    %443 = vmatpush1.bf16.msra.mxu0 %v424
    %444 = vmatprep.subr.bf16.mxu0 0
    %445 = vmatpush1.bf16.msra.mxu0 %v425
    %446 = vmatprep.subr.bf16.mxu0 0
    %447 = vmatpush1.bf16.msra.mxu0 %v426
    %448 = vmatprep.subr.bf16.mxu0 0
    %449 = vmatpush1.bf16.msra.mxu0 %v427
    %450 = vmatprep.subr.bf16.mxu0 0
    %451 = vmatpush1.bf16.msra.mxu0 %v428
    %452 = vmatprep.subr.bf16.mxu0 0
    %453 = vmatpush1.bf16.msra.mxu0 0
    %454 = vmatprep.subr.bf16.mxu0 0
    %455 = vmatpush1.bf16.msra.mxu0 0
    %456 = vmatprep.subr.bf16.mxu0 0
    %457 = vmatpush1.bf16.msra.mxu0 0
    %458 = vmatprep.subr.bf16.mxu0 0
    %459 = vmatpush1.bf16.msra.mxu0 0
    %460 = vmatprep.subr.bf16.mxu0 0
    %461 = vmatpush1.bf16.msra.mxu0 0
    %462 = vmatprep.subr.bf16.mxu0 0
    %463 = vmatpush1.bf16.msra.mxu0 0
    %464 = vmatprep.subr.bf16.mxu0 0
    %465 = vmatpush1.bf16.msra.mxu0 0
    %466 = vmatprep.subr.bf16.mxu0 0
    %467 = vmatpush1.bf16.msra.mxu0 0
    %468 = vmatprep.mubr.bf16.mxu0 0
    %469 = vmatmul.mubr.bf16.gmra.mrb[0].mxu0 %v404
    %v470 = vpop.f32.mrb[0].mxu0
    %v471 = vadd.f32 %v434, %v470
    %v472 = vpop.f32.mrb[0].mxu0
    %v473 = vpop.f32.mrb[0].mxu0
    %v474 = vadd.f32 %v434, %v473
    %v475 = vpop.f32.mrb[0].mxu0
    %476 = vdwg.mxu0
    %vm477 = vcmp.gt.f32.partialorder %v471, 0.0
    %vm478 = vcmp.gt.f32.partialorder %v474, 0.0
    %v479 = vmul.f32 %v471, 0.01
    %v480 = vmul.f32 %v474, 0.01
    %v481 = vsel %vm477, %v471, %v479
    %v482 = vsel %vm478, %v474, %v480
    %vm483 = vcmask 261120
    %484 = vst.msk [vmem:[#allocation7] sm:$0xff] %vm483, %v481
    %485 = vst.msk [vmem:[#allocation7 + $0x8] sm:$0xff] %vm483, %v482
    // Predicated region
    $region38: #{encoder_forward.1} parent=1 // pred_check
      _
    $region39: #{encoder_forward.1} parent=1 // pred_check_branch
      %487 = sbr.rel (0) target = $region41
    $region40: #{encoder_forward.1} parent=1 // pred_region
      %s489 = ssub.s32 256, 256
      %490 = vsyncadd [#allocation4], %s489
      %s491 = sshll.u32 [#allocation7], 4
      %s492 = int_to_ptr.vmem [resolvable:$true] %s491
      %497 = dma.vmem_to_hbm [thread:$0]  %s492, 256, %s7, [#allocation4], 128, 128, 8
    $region41: #{encoder_forward.1} parent=1 // pred_fallthru
      _
    // Predicated region
    $region42: #{encoder_forward.1} parent=1 // pred_check
      _
    $region43: #{encoder_forward.1} parent=1 // pred_check_branch
      %499 = sbr.rel (0) target = $region45
    $region44: #{encoder_forward.1} parent=1 // pred_region
      %500 = dma.done [#allocation4], 256
    $region45: #{encoder_forward.1} parent=1 // pred_fallthru
      _
    %501 = vsyncpa [#allocation3], 1
    %502 = vsyncpa [#allocation6], 1
    %503 = vsyncpa [#allocation4], 1

</llo_original>
